<compile_context>
chip_gen: v7x
topology: tpu7x:2x2x1
jax: 0.10.0
libtpu: 0.0.40
codegen_flags: <defaults>
</compile_context>

<pallas_src>
import functools

import jax
import jax.numpy as jnp
from jax.experimental import pallas as pl
from jax.experimental.pallas import tpu as pltpu


def _gcn_kernel(bias, adj_ref, x_ref, theta_ref, *rest):
    # adj_ref:   (tn, tn)  -- (c, e) tile of Adj
    # x_ref:     (tn, D)   -- (e, d) slice of X[a, b]    (a, b squeezed out)
    # theta_ref: (1, D)    -- f32
    # b_ref:     (1, D)    -- f32, present only when bias=True
    # o_ref:     (tn, D)   -- (c, d) slice of out[a, b]  (a, b squeezed out)
    # acc_ref:   (tn, D)   -- f32 accumulator scratch
    if bias:
        b_ref, o_ref, acc_ref = rest
    else:
        o_ref, acc_ref = rest
        b_ref = None

    e = pl.program_id(3)  # reduction axis (last, "arbitrary")

    @pl.when(e == 0)
    def _():
        acc_ref[...] = jnp.zeros_like(acc_ref)

    # (tn, tn) @ (tn, D) on the MXU, f32 accumulation.
    acc_ref[...] += jnp.dot(adj_ref[...], x_ref[...],
                            preferred_element_type=jnp.float32)

    @pl.when(e == pl.num_programs(3) - 1)
    def _():
        out = acc_ref[...] * theta_ref[...]
        if bias:  # static Python flag, resolved at trace time
            out = out + b_ref[...]
        o_ref[...] = out.astype(o_ref.dtype)


def _pick_node_tile(n, adj_itemsize):
    """Keep the full (N, N) Adj VMEM-resident while it fits a conservative
    budget (sized for v7x's smaller VMEM, with 2x double-buffer headroom);
    otherwise re-tile over (c, e)."""
    if 2 * n * n * adj_itemsize <= 24 * 1024 * 1024:
        return n
    for t in (1024, 512, 256, 128):
        if n % t == 0:
            return t
    # TODO(synk): ragged N (not a multiple of 128) needs edge masking in the
    # re-tiled reduction path; fall back to the full block.
    return n


def gcn_layer(adj, x, theta, b=None, *, bias=False, block_n=None):
    """adj: (N, N), x: (A, B, N, D), theta: (D,), b: (1,1,1,D) -> (A, B, N, D)."""
    A, B, N, D = x.shape
    assert adj.shape == (N, N)

    if block_n is None:
        block_n = _pick_node_tile(N, adj.dtype.itemsize)
    assert N % block_n == 0, "node tile must divide N"
    n_tiles = N // block_n

    theta2 = theta.reshape(1, D).astype(jnp.float32)

    args = [adj, x, theta2]
    in_specs = [
        # Adj (c, e) tile; independent of (a, b), so it stays resident across them.
        pl.BlockSpec((block_n, block_n), lambda a, b_, c, e: (c, e)),
        # X in native layout; batch dims squeezed -> kernel sees (block_n, D).
        pl.BlockSpec((None, None, block_n, D), lambda a, b_, c, e: (a, b_, e, 0)),
        # theta broadcast to every step.
        pl.BlockSpec((1, D), lambda a, b_, c, e: (0, 0)),
    ]
    if bias:
        b2 = b.reshape(1, D).astype(jnp.float32)
        args.append(b2)
        in_specs.append(pl.BlockSpec((1, D), lambda a, b_, c, e: (0, 0)))

    grid = (A, B, n_tiles, n_tiles)  # reduction axis (e) last

    # Advisory cost hint for XLA's scheduler around the custom call.
    flops = 2 * A * B * N * N * D + (2 if bias else 1) * A * B * N * D
    bytes_accessed = (adj.size * adj.dtype.itemsize
                      + 2 * x.size * x.dtype.itemsize   # X in + out
                      + D * 4 * (2 if bias else 1))
    cost = pl.CostEstimate(flops=int(flops), transcendentals=0,
                           bytes_accessed=int(bytes_accessed))

    # Raise the scoped-VMEM limit only when the Adj-resident path needs more
    # than v5e's 16 MiB default; keep headroom under v7x's 64 MiB physical.
    per_step_vmem = (2 * (block_n * block_n * adj.dtype.itemsize      # Adj (2x buf)
                          + 2 * block_n * D * x.dtype.itemsize        # X + out (2x buf)
                          + (2 if bias else 1) * D * 4)               # theta / b
                     + block_n * D * 4)                               # accumulator
    compiler_kwargs = {}
    if per_step_vmem > 16 * 1024 * 1024:
        compiler_kwargs["vmem_limit_bytes"] = min(int(per_step_vmem * 1.5),
                                                  48 * 1024 * 1024)

    return pl.pallas_call(
        functools.partial(_gcn_kernel, bias),
        out_shape=jax.ShapeDtypeStruct((A, B, N, D), x.dtype),
        grid=grid,
        in_specs=in_specs,
        out_specs=pl.BlockSpec((None, None, block_n, D),
                               lambda a, b_, c, e: (a, b_, c, 0)),
        scratch_shapes=[pltpu.VMEM((block_n, D), jnp.float32)],
        compiler_params=pltpu.CompilerParams(
            dimension_semantics=("parallel", "parallel", "parallel", "arbitrary"),
            **compiler_kwargs),
        cost_estimate=cost,
    )(*args)


def gcn_layer_ref(adj, x, theta, b, *, bias=False):
    agg = jnp.einsum('ce,abed->abcd', adj, x,
                     precision=jax.lax.Precision.HIGHEST)
    out = jnp.einsum('abcd,d->abcd', agg, theta,
                     precision=jax.lax.Precision.HIGHEST)
    if bias:
        out = out + b
    return out


if __name__ == "__main__":
    # signal_shape = (N, D): N = number of nodes (8), D = feature dim (32)
    A, B, N, D = 2, 3, 8, 32

    key = jax.random.PRNGKey(0)
    k_adj, k_x, k_theta = jax.random.split(key, 3)

    # Parameters (matching GCN_layer.__init__ shapes)
    W = jnp.ones((N, N), dtype=jnp.float32)   # declared in __init__, unused in forward
    theta = jax.random.normal(k_theta, (D,), dtype=jnp.float32)
    b = jnp.full((1, 1, 1, D), 0.1, dtype=jnp.float32)

    # Inputs
    adj = jax.random.normal(k_adj, (N, N), dtype=jnp.float32)
    x = jax.random.normal(k_x, (A, B, N, D), dtype=jnp.float32)

    # 1) f32 path, bias off / on (native layout in and out, no wrapper permutes).
    for use_bias in (False, True):
        out = jax.block_until_ready(
            gcn_layer(adj, x, theta, b if use_bias else None, bias=use_bias))
        ref = gcn_layer_ref(adj, x, theta, b, bias=use_bias)
        assert out.shape == (A, B, N, D)
        assert jnp.allclose(out, ref, atol=2e-2, rtol=2e-2), "f32 mismatch"

    # 2) bf16 operand fast path (half DMA bytes, 2x MXU rate), f32 accumulation.
    adj_bf, x_bf = adj.astype(jnp.bfloat16), x.astype(jnp.bfloat16)
    out_bf = jax.block_until_ready(gcn_layer(adj_bf, x_bf, theta, b, bias=True))
    ref_bf = gcn_layer_ref(adj_bf.astype(jnp.float32), x_bf.astype(jnp.float32),
                           theta, b, bias=True)
    assert out_bf.dtype == jnp.bfloat16
    assert jnp.allclose(out_bf.astype(jnp.float32), ref_bf,
                        atol=1e-1, rtol=5e-2), "bf16 mismatch"

    # 3) Large-N reduction-tiled path (Adj tiled over (c, e), f32 accumulator).
    N2 = 256
    k_adj2, k_x2 = jax.random.split(jax.random.PRNGKey(1), 2)
    adj2 = jax.random.normal(k_adj2, (N2, N2), dtype=jnp.float32)
    x2 = jax.random.normal(k_x2, (1, 2, N2, D), dtype=jnp.float32)
    out2 = jax.block_until_ready(
        gcn_layer(adj2, x2, theta, b, bias=True, block_n=128))
    ref2 = gcn_layer_ref(adj2, x2, theta, b, bias=True)
    assert jnp.allclose(out2, ref2, atol=2e-2, rtol=2e-2), "tiled-path mismatch"

    print("KERNEL_OK")
</pallas_src>

<mosaic_0001>
module attributes {stable_mosaic.version = 11 : i64} {
  func.func @_gcn_kernel(%arg0: i32, %arg1: i32, %arg2: i32, %arg3: i32, %arg4: memref<8x8xf32, #tpu.memory_space<vmem>>, %arg5: memref<1x1x8x32xf32, #tpu.memory_space<vmem>>, %arg6: memref<1x32xf32, #tpu.memory_space<vmem>>, %arg7: memref<1x1x8x32xf32, #tpu.memory_space<vmem>>, %arg8: memref<8x32xf32, #tpu.memory_space<vmem>>) attributes {dimension_semantics = [#tpu.dimension_semantics<parallel>, #tpu.dimension_semantics<parallel>, #tpu.dimension_semantics<parallel>, #tpu.dimension_semantics<arbitrary>], iteration_bounds = array<i64: 2, 3, 1, 1>, scalar_prefetch = 0 : i64, scratch_operands = 1 : i64, tpu.core_type = #tpu.core_type<tc>, window_params = [{transform_indices = @transform_0, window_bounds = array<i64: 8, 8>}, {transform_indices = @transform_1, window_bounds = array<i64: 1, 1, 8, 32>}, {pipeline_mode = #tpu.pipeline_mode<synchronous>, transform_indices = @transform_2, window_bounds = array<i64: 1, 32>}, {transform_indices = @transform_3, window_bounds = array<i64: 1, 1, 8, 32>}]} {
    %c0_i32 = arith.constant 0 : i32
    %0 = arith.cmpi eq, %arg3, %c0_i32 : i32
    %1 = arith.extui %0 : i1 to i32
    %c0_i32_0 = arith.constant 0 : i32
    %2 = arith.cmpi ne, %1, %c0_i32_0 : i32
    scf.if %2 {
      %cst_12 = arith.constant 0.000000e+00 : f32
      %13 = vector.broadcast %cst_12 : f32 to vector<8x32xf32>
      %c0_13 = arith.constant 0 : index
      %c0_14 = arith.constant 0 : index
      %14 = vector.load %arg8[%c0_13, %c0_14] : memref<8x32xf32, #tpu.memory_space<vmem>>, vector<8x32xf32>
      tpu.vector_store %arg8[%c0_13, %c0_14], %13 {strides = array<i32>} : memref<8x32xf32, #tpu.memory_space<vmem>>, vector<8x32xf32>,
    } else {
    }
    %c0 = arith.constant 0 : index
    %c0_1 = arith.constant 0 : index
    %3 = vector.load %arg8[%c0, %c0_1] : memref<8x32xf32, #tpu.memory_space<vmem>>, vector<8x32xf32>
    %c0_2 = arith.constant 0 : index
    %c0_3 = arith.constant 0 : index
    %4 = vector.load %arg4[%c0_2, %c0_3] : memref<8x8xf32, #tpu.memory_space<vmem>>, vector<8x8xf32>
    %c0_4 = arith.constant 0 : index
    %c0_5 = arith.constant 0 : index
    %c0_6 = arith.constant 0 : index
    %c0_7 = arith.constant 0 : index
    %5 = vector.load %arg5[%c0_4, %c0_5, %c0_6, %c0_7] : memref<1x1x8x32xf32, #tpu.memory_space<vmem>>, vector<1x1x8x32xf32>
    %6 = vector.shape_cast %5 : vector<1x1x8x32xf32> to vector<8x32xf32>
    %cst = arith.constant dense<0.000000e+00> : vector<8x32xf32>
    %7 = tpu.matmul %4, %6, %cst {dimension_numbers = #tpu.dot_dimension_numbers<[1], [0], [0], [1], [0, 0, 1, 1], [], []>} : vector<8x8xf32>, vector<8x32xf32>, vector<8x32xf32> -> vector<8x32xf32>
    %8 = arith.addf %3, %7 : vector<8x32xf32>
    %c0_8 = arith.constant 0 : index
    %c0_9 = arith.constant 0 : index
    %9 = vector.load %arg8[%c0_8, %c0_9] : memref<8x32xf32, #tpu.memory_space<vmem>>, vector<8x32xf32>
    tpu.vector_store %arg8[%c0_8, %c0_9], %8 {strides = array<i32>} : memref<8x32xf32, #tpu.memory_space<vmem>>, vector<8x32xf32>,
    %c0_i32_10 = arith.constant 0 : i32
    %10 = arith.cmpi eq, %arg3, %c0_i32_10 : i32
    %11 = arith.extui %10 : i1 to i32
    %c0_i32_11 = arith.constant 0 : i32
    %12 = arith.cmpi ne, %11, %c0_i32_11 : i32
    scf.if %12 {
      %c0_12 = arith.constant 0 : index
      %c0_13 = arith.constant 0 : index
      %13 = vector.load %arg8[%c0_12, %c0_13] : memref<8x32xf32, #tpu.memory_space<vmem>>, vector<8x32xf32>
      %c0_14 = arith.constant 0 : index
      %c0_15 = arith.constant 0 : index
      %14 = vector.load %arg6[%c0_14, %c0_15] : memref<1x32xf32, #tpu.memory_space<vmem>>, vector<1x32xf32>
      %15 = vector.broadcast %14 : vector<1x32xf32> to vector<8x32xf32>
      %16 = arith.mulf %13, %15 : vector<8x32xf32>
      %c0_16 = arith.constant 0 : index
      %c0_17 = arith.constant 0 : index
      %c0_18 = arith.constant 0 : index
      %c0_19 = arith.constant 0 : index
      %17 = vector.load %arg7[%c0_16, %c0_17, %c0_18, %c0_19] : memref<1x1x8x32xf32, #tpu.memory_space<vmem>>, vector<1x1x8x32xf32>
      %18 = vector.shape_cast %17 : vector<1x1x8x32xf32> to vector<8x32xf32>
      %19 = vector.shape_cast %16 : vector<8x32xf32> to vector<1x1x8x32xf32>
      tpu.vector_store %arg7[%c0_16, %c0_17, %c0_18, %c0_19], %19 {strides = array<i32>} : memref<1x1x8x32xf32, #tpu.memory_space<vmem>>, vector<1x1x8x32xf32>,
    } else {
    }
    return
  }
  func.func @transform_0(%arg0: i32, %arg1: i32, %arg2: i32, %arg3: i32) -> (i32, i32) {
    %c0_i32 = arith.constant 0 : i32
    return %arg2, %arg3 : i32, i32
  }
  func.func @transform_1(%arg0: i32, %arg1: i32, %arg2: i32, %arg3: i32) -> (i32, i32, i32, i32) {
    %c0_i32 = arith.constant 0 : i32
    %c0_i32_0 = arith.constant 0 : i32
    return %arg0, %arg1, %arg3, %c0_i32 : i32, i32, i32, i32
  }
  func.func @transform_2(%arg0: i32, %arg1: i32, %arg2: i32, %arg3: i32) -> (i32, i32) {
    %c0_i32 = arith.constant 0 : i32
    %c0_i32_0 = arith.constant 0 : i32
    %c0_i32_1 = arith.constant 0 : i32
    return %c0_i32, %c0_i32_0 : i32, i32
  }
  func.func @transform_3(%arg0: i32, %arg1: i32, %arg2: i32, %arg3: i32) -> (i32, i32, i32, i32) {
    %c0_i32 = arith.constant 0 : i32
    %c0_i32_0 = arith.constant 0 : i32
    return %arg0, %arg1, %arg2, %c0_i32 : i32, i32, i32, i32
  }
}

</mosaic_0001>

<llo_original>
// kernel: tpu_custom_call.1
$region0: #{tpu_custom_call.1}
  #allocation0 [shape = 'u32[]', space=smem, size = 0x4, offset = 0x4, fixed_abs, tag = 'smem constant byte address 0x4 - core index']
  #allocation1 [shape = 'u32[144,128]{1,0:T(1,128)}', space=vmem, size = 0x12000, scoped, tag = 'internal scratch']
  #allocation2 [shape = 'f32[8,32]{1,0:T(8,128)}', space=vmem, size = 0x1000, scoped, tag = 'scratch operand']
  %s0 = inlined_call_operand.hbm [shape: f32[8,8], index: 0, kind: input, shape index: {}]
  %s1 = inlined_call_operand.hbm [shape: f32[2,3,8,32], index: 1, kind: input, shape index: {}]
  %s2 = inlined_call_operand.vmem [shape: f32[1,32], index: 2, kind: input, shape index: {}]
  %s3 = inlined_call_operand.hbm [shape: f32[2,3,8,32], index: 3, kind: output, shape index: {}]
  %s4 = sld [smem:[#allocation0]]
  $region61: #{tpu_custom_call.1} parent=0
    _
  %s6 = ssub.s32 1, %s4
  %s7 = scalar_select 0, %s6, %s4
  $region1: #{tpu_custom_call.1} parent=0
    #allocation3 [shape = 'u8[4096]{0}', space=vmem, size = 0x1000, scoped, tag = 'input window, operand 0, single buffered']
    #allocation4 [shape = 's32[2]{0}', space=sflag, size = 0x8, scoped, tag = 'scoped memory for tpu_custom_call.1']
    #allocation5 [shape = 's32[2]{0}', space=sflag, size = 0x8, scoped, tag = 'scoped memory for tpu_custom_call.1']
    #allocation6 [shape = 'u8[8192]{0}', space=vmem, size = 0x2000, scoped, tag = 'input window, operand 1']
    #allocation7 [shape = 's32[2]{0}', space=sflag, size = 0x8, scoped, tag = 'scoped memory for tpu_custom_call.1']
    #allocation8 [shape = 'u8[8192]{0}', space=vmem, size = 0x2000, scoped, tag = 'output window, operand 0']
    %8 = vsyncpa [#allocation4], 0
    %9 = vsyncpa [#allocation7], 0
    %s10 = scalar_lea.sflag [#allocation7], 1
    %11 = vsyncpa %s10, 0
    %12 = vsyncpa [#allocation5], 0
    %s13 = scalar_lea.sflag [#allocation5], 1
    %14 = vsyncpa %s13, 0
    loop: start=0, step=1, limit=8
    $region2: #{tpu_custom_call.1} parent=1 // loop_pre_header
      _
    $region3: #{tpu_custom_call.1} parent=1 // loop_header
      %s16 = sphi 0, %s20
      %p17 = scmp.ge.s32.totalorder %s16, 8
      %s23 = sphi 0, %s49
      %s24 = sphi 0, %s45
      %s25 = sphi 0, %s41
      %s26 = sphi 0, %s37
      %s27 = sphi 0, %s23
      %s28 = sphi 0, %s24
      %s29 = sphi 0, %s25
      %s30 = sphi 0, %s26
      %s31 = sphi 0, %s27
      %s32 = sphi 0, %s28
      %s33 = sphi 0, %s29
      %s34 = sphi 0, %s30
      %s54 = sphi 0, %s56
      %s57 = sphi 0, %s54
      %s58 = sphi 0, %s57
      %s74 = sphi 0, %s58
      %s84 = sphi 0, %s86
      %s87 = sphi 0, %s84
      %s88 = sphi 0, %s87
      %s104 = sphi 0, %s88
      %s108 = sphi 0, %s108
      %s110 = sphi 0, %s108
      %s111 = sphi 0, %s110
      %s125 = sphi 0, %s111
      %s135 = sphi 0, %s137
      %s138 = sphi 0, %s135
      %s139 = sphi 0, %s138
      %s155 = sphi 0, %s139
    $region4: #{tpu_custom_call.1} parent=1 // loop_header_branch
      %19 = sbr.rel (%p17) target = $region8
    $region5: #{tpu_custom_call.1} parent=1 // loop_body
      %s21 = ssub.s32 %s16, 1
      %s22 = ssub.s32 %s16, 2
      %s35 = sadd.s32 1, %s26
      %p36 = scmp.ge.s32.totalorder %s35, 1
      %s37 = scalar_select %p36, 0, %s35
      %s38 = sadd.s32 1, %s25
      %s39 = scalar_select %p36, %s38, %s25
      %p40 = scmp.ge.s32.totalorder %s39, 1
      %s41 = scalar_select %p40, 0, %s39
      %s42 = sadd.s32 1, %s24
      %s43 = scalar_select %p40, %s42, %s24
      %p44 = scmp.ge.s32.totalorder %s43, 3
      %s45 = scalar_select %p44, 0, %s43
      %s46 = sadd.s32 1, %s23
      %s47 = scalar_select %p44, %s46, %s23
      %p48 = scmp.ge.s32.totalorder %s47, 2
      %s49 = scalar_select %p48, 0, %s47
      %s50 = ssub.s32 %s25, %s41
      %s51 = ssub.s32 %s26, %s37
      %s52 = sor.u32 %s50, %s51
      %p53 = scmp.eq.s32.totalorder %s52, 0
      %s55 = sadd.s32 %s54, 1
      %s56 = scalar_select %p53, %s54, %s55
      %p59 = pneg %p53
      %p60 = scmp.eq.s32.totalorder %s16, 5
      %p61 = por %p59, %p60
      %p62 = scmp.ne.s32.totalorder %s54, %s57
      %p63 = scmp.eq.s32.totalorder %s16, 0
      %p64 = por %p62, %p63
      %p65 = scmp.ne.s32.totalorder %s54, %s57
      %p66 = scmp.eq.s32.totalorder %s21, 5
      %p67 = por %p65, %p66
      %p68 = scmp.ne.s32.totalorder %s57, %s58
      %p69 = scmp.eq.s32.totalorder %s21, 0
      %p70 = por %p68, %p69
      %p71 = scmp.ne.s32.totalorder %s57, %s58
      %p72 = scmp.eq.s32.totalorder %s22, 5
      %p73 = por %p71, %p72
      %p75 = scmp.ne.s32.totalorder %s58, %s74
      %p76 = scmp.eq.s32.totalorder %s22, 0
      %p77 = por %p75, %p76
      %s78 = ssub.s32 %s23, %s49
      %s79 = ssub.s32 %s24, %s45
      %s80 = sor.u32 %s78, %s79
      %s81 = ssub.s32 %s26, %s37
      %s82 = sor.u32 %s80, %s81
      %p83 = scmp.eq.s32.totalorder %s82, 0
      %s85 = sadd.s32 %s84, 1
      %s86 = scalar_select %p83, %s84, %s85
      %p89 = pneg %p83
      %p90 = scmp.eq.s32.totalorder %s16, 5
      %p91 = por %p89, %p90
      %p92 = scmp.ne.s32.totalorder %s84, %s87
      %p93 = scmp.eq.s32.totalorder %s16, 0
      %p94 = por %p92, %p93
      %p95 = scmp.ne.s32.totalorder %s84, %s87
      %p96 = scmp.eq.s32.totalorder %s21, 5
      %p97 = por %p95, %p96
      %p98 = scmp.ne.s32.totalorder %s87, %s88
      %p99 = scmp.eq.s32.totalorder %s21, 0
      %p100 = por %p98, %p99
      %p101 = scmp.ne.s32.totalorder %s87, %s88
      %p102 = scmp.eq.s32.totalorder %s22, 5
      %p103 = por %p101, %p102
      %p105 = scmp.ne.s32.totalorder %s88, %s104
      %p106 = scmp.eq.s32.totalorder %s22, 0
      %p107 = por %p105, %p106
      %s109 = sadd.s32 %s108, 1
      %p112 = scmp.eq.s32.totalorder %s16, 5
      %p113 = scmp.ne.s32.totalorder %s108, %s110
      %p114 = scmp.eq.s32.totalorder %s16, 0
      %p115 = por %p113, %p114
      %p116 = scmp.ne.s32.totalorder %s108, %s110
      %p117 = scmp.eq.s32.totalorder %s21, 5
      %p118 = por %p116, %p117
      %p119 = scmp.ne.s32.totalorder %s110, %s111
      %p120 = scmp.eq.s32.totalorder %s21, 0
      %p121 = por %p119, %p120
      %p122 = scmp.ne.s32.totalorder %s110, %s111
      %p123 = scmp.eq.s32.totalorder %s22, 5
      %p124 = por %p122, %p123
      %p126 = scmp.ne.s32.totalorder %s111, %s125
      %p127 = scmp.eq.s32.totalorder %s22, 0
      %p128 = por %p126, %p127
      %s129 = ssub.s32 %s23, %s49
      %s130 = ssub.s32 %s24, %s45
      %s131 = sor.u32 %s129, %s130
      %s132 = ssub.s32 %s25, %s41
      %s133 = sor.u32 %s131, %s132
      %p134 = scmp.eq.s32.totalorder %s133, 0
      %s136 = sadd.s32 %s135, 1
      %s137 = scalar_select %p134, %s135, %s136
      %p140 = pneg %p134
      %p141 = scmp.eq.s32.totalorder %s16, 5
      %p142 = por %p140, %p141
      %p143 = scmp.ne.s32.totalorder %s135, %s138
      %p144 = scmp.eq.s32.totalorder %s16, 0
      %p145 = por %p143, %p144
      %p146 = scmp.ne.s32.totalorder %s135, %s138
      %p147 = scmp.eq.s32.totalorder %s21, 5
      %p148 = por %p146, %p147
      %p149 = scmp.ne.s32.totalorder %s138, %s139
      %p150 = scmp.eq.s32.totalorder %s21, 0
      %p151 = por %p149, %p150
      %p152 = scmp.ne.s32.totalorder %s138, %s139
      %p153 = scmp.eq.s32.totalorder %s22, 5
      %p154 = por %p152, %p153
      %p156 = scmp.ne.s32.totalorder %s139, %s155
      %p157 = scmp.eq.s32.totalorder %s22, 0
      %p158 = por %p156, %p157
      %p159 = scmp.le.s32.totalorder 1, %s16
      %p160 = scmp.lt.s32.totalorder %s16, 7
      %p161 = pnand %p159, %p160
      %p162 = pneg %p161
      // Predicated region
      $region9: #{tpu_custom_call.1} parent=5 // pred_check
        _
      $region10: #{tpu_custom_call.1} parent=5 // pred_check_branch
        %164 = sbr.rel (%p161) target = $region12
      $region11: #{tpu_custom_call.1} parent=5 // pred_region
        %s165 = ssub.s32 %s16, 1
        // Predicated region
        $region13: #{tpu_custom_call.1} parent=11 // pred_check
          %p166 = pneg %p70
        $region14: #{tpu_custom_call.1} parent=11 // pred_check_branch
          %168 = sbr.rel (%p166) target = $region16
        $region15: #{tpu_custom_call.1} parent=11 // pred_region
          %s170 = ssub.s32 128, 128
          %171 = vsyncadd [#allocation4], %s170
          %s172 = sadd.s32 %s30, %s29
          %s173 = smul.addr %s172, 128
          %s174 = scalar_lea.hbm %s0, %s173
          %s176 = sshll.u32 [#allocation3], 4
          %s177 = int_to_ptr.vmem [resolvable:$true] %s176
          %179 = dma.hbm_to_vmem [thread:$0]  %s174, 128, %s177, [#allocation4]
        $region16: #{tpu_custom_call.1} parent=11 // pred_fallthru
          _
        // Predicated region
        $region17: #{tpu_custom_call.1} parent=11 // pred_check
          %p180 = pneg %p121
        $region18: #{tpu_custom_call.1} parent=11 // pred_check_branch
          %182 = sbr.rel (%p180) target = $region20
        $region19: #{tpu_custom_call.1} parent=11 // pred_region
          _
        $region20: #{tpu_custom_call.1} parent=11 // pred_fallthru
          _
      $region12: #{tpu_custom_call.1} parent=5 // pred_fallthru
        _
      %p183 = scmp.lt.s32.totalorder %s16, 6
      // Predicated region
      $region21: #{tpu_custom_call.1} parent=5 // pred_check
        %p184 = pneg %p183
      $region22: #{tpu_custom_call.1} parent=5 // pred_check_branch
        %186 = sbr.rel (%p184) target = $region24
      $region23: #{tpu_custom_call.1} parent=5 // pred_region
        // Predicated region
        $region25: #{tpu_custom_call.1} parent=23 // pred_check
          %p187 = pneg %p94
        $region26: #{tpu_custom_call.1} parent=23 // pred_check_branch
          %189 = sbr.rel (%p187) target = $region28
        $region27: #{tpu_custom_call.1} parent=23 // pred_region
          %s190 = sand.u32 %s84, 1
          %s191 = scalar_lea.sflag [#allocation7], %s190
          %s192 = sand.u32 %s84, 1
          %s193 = smul.addr %s192, 8
          %s194 = scalar_lea.vmem [#allocation6], %s193
          %s196 = ssub.s32 128, 128
          %197 = vsyncadd %s191, %s196
          %s198 = sadd.s32 %s26, %s24
          %s199 = smul.addr %s23, 3
          %s200 = sadd.s32 %s198, %s199
          %s201 = smul.addr %s200, 128
          %s202 = scalar_lea.hbm %s1, %s201
          %s204 = sshll.u32 %s194, 4
          %s205 = int_to_ptr.vmem [resolvable:$true] %s204
          %207 = dma.hbm_to_vmem [thread:$0]  %s202, 128, %s205, %s191
        $region28: #{tpu_custom_call.1} parent=23 // pred_fallthru
          _
      $region24: #{tpu_custom_call.1} parent=5 // pred_fallthru
        _
      %p208 = scmp.le.s32.totalorder 1, %s16
      %p209 = scmp.lt.s32.totalorder %s16, 7
      %p210 = pnand %p208, %p209
      %p211 = pneg %p210
      // Predicated region
      $region29: #{tpu_custom_call.1} parent=5 // pred_check
        _
      $region30: #{tpu_custom_call.1} parent=5 // pred_check_branch
        %213 = sbr.rel (%p210) target = $region32
      $region31: #{tpu_custom_call.1} parent=5 // pred_region
        %s214 = ssub.s32 %s16, 1
        // Predicated region
        $region33: #{tpu_custom_call.1} parent=31 // pred_check
          %p215 = pneg %p70
        $region34: #{tpu_custom_call.1} parent=31 // pred_check_branch
          %217 = sbr.rel (%p215) target = $region36
        $region35: #{tpu_custom_call.1} parent=31 // pred_region
          %218 = dma.done [#allocation4], 128
        $region36: #{tpu_custom_call.1} parent=31 // pred_fallthru
          _
        %s219 = sand.u32 %s87, 1
        %s220 = scalar_lea.sflag [#allocation7], %s219
        %s221 = sand.u32 %s87, 1
        %s222 = smul.addr %s221, 8
        %s223 = scalar_lea.vmem [#allocation6], %s222
        // Predicated region
        $region37: #{tpu_custom_call.1} parent=31 // pred_check
          %p224 = pneg %p100
        $region38: #{tpu_custom_call.1} parent=31 // pred_check_branch
          %226 = sbr.rel (%p224) target = $region40
        $region39: #{tpu_custom_call.1} parent=31 // pred_region
          %227 = dma.done %s220, 128
        $region40: #{tpu_custom_call.1} parent=31 // pred_fallthru
          _
        %p228 = pneg %p70
        %p229 = pneg %p67
        %s230 = sand.u32 %s87, 1
        %s231 = scalar_lea.sflag [#allocation7], %s230
        %s232 = sand.u32 %s87, 1
        %s233 = smul.addr %s232, 8
        %s234 = scalar_lea.vmem [#allocation6], %s233
        %p235 = pneg %p100
        %p236 = pneg %p97
        %p237 = pneg %p121
        %p238 = pneg %p118
        %p239 = pneg %p151
        %p240 = pneg %p148
        %s241 = sand.u32 %s138, 1
        %s242 = scalar_lea.sflag [#allocation5], %s241
        %s243 = sand.u32 %s138, 1
        %s244 = smul.addr %s243, 8
        %s245 = scalar_lea.vmem [#allocation8], %s244
        %p246 = scmp.eq.s32.totalorder %s30, 0
        // Predicated region
        $region41: #{tpu_custom_call.1} parent=31 // pred_check
          %p247 = pneg %p246
        $region42: #{tpu_custom_call.1} parent=31 // pred_check_branch
          %249 = sbr.rel (%p247) target = $region44
        $region43: #{tpu_custom_call.1} parent=31 // pred_region
          %vm250 = vcmask 261120
          %251 = vst.msk [vmem:[#allocation2] sm:$0xff] %vm250, 0.0
        $region44: #{tpu_custom_call.1} parent=31 // pred_fallthru
          _
        %v252 = vld [vmem:[#allocation2] sm:$0xff]
        %v253 = vld [vmem:[#allocation3] sm:$0xff]
        %v254 = vld [vmem:[%s223] sm:$0xff]
        %vm255 = vcmask 64512
        %v257 = vsel %vm255, %v253, 0
        %259 = vmatprep.subr.mxu0 0.0
        %260 = vmatpush1.msra.mxu0 %v254
        %261 = vmatprep.subr.mxu0 0.0
        %262 = vmatpush1.msra.mxu0 0.0
        %263 = vmatprep.subr.mxu0 0.0
        %264 = vmatpush1.msra.mxu0 0.0
        %265 = vmatprep.subr.mxu0 0.0
        %266 = vmatpush1.msra.mxu0 0.0
        %267 = vmatprep.subr.mxu0 0.0
        %268 = vmatpush1.msra.mxu0 0.0
        %269 = vmatprep.subr.mxu0 0.0
        %270 = vmatpush1.msra.mxu0 0.0
        %271 = vmatprep.subr.mxu0 0.0
        %272 = vmatpush1.msra.mxu0 0.0
        %273 = vmatprep.subr.mxu0 0.0
        %274 = vmatpush1.msra.mxu0 0.0
        %275 = vmatprep.subr.mxu0 0.0
        %276 = vmatpush1.msra.mxu0 0.0
        %277 = vmatprep.subr.mxu0 0.0
        %278 = vmatpush1.msra.mxu0 0.0
        %279 = vmatprep.subr.mxu0 0.0
        %280 = vmatpush1.msra.mxu0 0.0
        %281 = vmatprep.subr.mxu0 0.0
        %282 = vmatpush1.msra.mxu0 0.0
        %283 = vmatprep.subr.mxu0 0.0
        %284 = vmatpush1.msra.mxu0 0.0
        %285 = vmatprep.subr.mxu0 0.0
        %286 = vmatpush1.msra.mxu0 0.0
        %287 = vmatprep.subr.mxu0 0.0
        %288 = vmatpush1.msra.mxu0 0.0
        %289 = vmatprep.subr.mxu0 0.0
        %290 = vmatpush1.msra.mxu0 0.0
        %291 = vmatprep.subr.mxu0 0.0
        %292 = vmatpush1.msra.mxu0 0.0
        %293 = vmatprep.subr.mxu0 0.0
        %294 = vmatpush1.msra.mxu0 0.0
        %295 = vmatprep.subr.mxu0 0.0
        %296 = vmatpush1.msra.mxu0 0.0
        %297 = vmatprep.subr.mxu0 0.0
        %298 = vmatpush1.msra.mxu0 0.0
        %299 = vmatprep.subr.mxu0 0.0
        %300 = vmatpush1.msra.mxu0 0.0
        %301 = vmatprep.subr.mxu0 0.0
        %302 = vmatpush1.msra.mxu0 0.0
        %303 = vmatprep.subr.mxu0 0.0
        %304 = vmatpush1.msra.mxu0 0.0
        %305 = vmatprep.subr.mxu0 0.0
        %306 = vmatpush1.msra.mxu0 0.0
        %307 = vmatprep.subr.mxu0 0.0
        %308 = vmatpush1.msra.mxu0 0.0
        %309 = vmatprep.subr.mxu0 0.0
        %310 = vmatpush1.msra.mxu0 0.0
        %311 = vmatprep.subr.mxu0 0.0
        %312 = vmatpush1.msra.mxu0 0.0
        %313 = vmatprep.subr.mxu0 0.0
        %314 = vmatpush1.msra.mxu0 0.0
        %315 = vmatprep.subr.mxu0 0.0
        %316 = vmatpush1.msra.mxu0 0.0
        %317 = vmatprep.subr.mxu0 0.0
        %318 = vmatpush1.msra.mxu0 0.0
        %319 = vmatprep.subr.mxu0 0.0
        %320 = vmatpush1.msra.mxu0 0.0
        %321 = vmatprep.subr.mxu0 0.0
        %322 = vmatpush1.msra.mxu0 0.0
        %323 = vmatprep.mubr.f32.mxu0 0.0
        %324 = vmatmul.mubr.f32.gmra.mrb[0].mxu0 %v257
        %v325 = vpop.f32.mrb[0].mxu0
        %v326 = vadd.f32 0.0, %v325
        %v327 = vpop.f32.mrb[0].mxu0
        %328 = vdwg.mxu0
        %v329 = vadd.f32 %v252, %v326
        %vm330 = vcmask 261120
        %331 = vst.msk [vmem:[#allocation2] sm:$0xff] %vm330, %v329
        // Predicated region
        $region45: #{tpu_custom_call.1} parent=31 // pred_check
          %p332 = pneg %p246
        $region46: #{tpu_custom_call.1} parent=31 // pred_check_branch
          %334 = sbr.rel (%p332) target = $region48
        $region47: #{tpu_custom_call.1} parent=31 // pred_region
          %v335 = vld [vmem:[#allocation2] sm:$0xff]
          %v336 = vld [vmem:[%s2] sm:$0x1]
          %v338 = vlaneseq
          %v339 = vshrl.u32 %v338, 7
          %v340 = vsub.s32 0, %v339
          %v341 = vrot.slane %v336, %v340
          %v343 = vmul.f32 %v335, %v341
          %344 = vst.msk [vmem:[%s245] sm:$0xff] %vm330, %v343
        $region48: #{tpu_custom_call.1} parent=31 // pred_fallthru
          _
        %s345 = sand.u32 %s138, 1
        %s346 = scalar_lea.sflag [#allocation5], %s345
        %s347 = sand.u32 %s138, 1
        %s348 = smul.addr %s347, 8
        %s349 = scalar_lea.vmem [#allocation8], %s348
        // Predicated region
        $region49: #{tpu_custom_call.1} parent=31 // pred_check
          %p350 = pneg %p148
        $region50: #{tpu_custom_call.1} parent=31 // pred_check_branch
          %352 = sbr.rel (%p350) target = $region52
        $region51: #{tpu_custom_call.1} parent=31 // pred_region
          %s354 = ssub.s32 128, 128
          %355 = vsyncadd %s346, %s354
          %s356 = sadd.s32 %s29, %s28
          %s357 = smul.addr %s27, 3
          %s358 = sadd.s32 %s356, %s357
          %s359 = smul.addr %s358, 128
          %s360 = scalar_lea.hbm %s3, %s359
          %s362 = sshll.u32 %s349, 4
          %s363 = int_to_ptr.vmem [resolvable:$true] %s362
          %365 = dma.vmem_to_hbm [thread:$0]  %s363, 128, %s360, %s346
        $region52: #{tpu_custom_call.1} parent=31 // pred_fallthru
          _
      $region32: #{tpu_custom_call.1} parent=5 // pred_fallthru
        _
      %p366 = scmp.le.s32.totalorder 2, %s16
      // Predicated region
      $region53: #{tpu_custom_call.1} parent=5 // pred_check
        %p367 = pneg %p366
      $region54: #{tpu_custom_call.1} parent=5 // pred_check_branch
        %369 = sbr.rel (%p367) target = $region56
      $region55: #{tpu_custom_call.1} parent=5 // pred_region
        %s370 = ssub.s32 %s16, 2
        // Predicated region
        $region57: #{tpu_custom_call.1} parent=55 // pred_check
          %p371 = pneg %p154
        $region58: #{tpu_custom_call.1} parent=55 // pred_check_branch
          %373 = sbr.rel (%p371) target = $region60
        $region59: #{tpu_custom_call.1} parent=55 // pred_region
          %s374 = sand.u32 %s139, 1
          %s375 = scalar_lea.sflag [#allocation5], %s374
          %s376 = sand.u32 %s139, 1
          %s377 = smul.addr %s376, 8
          %s378 = scalar_lea.vmem [#allocation8], %s377
          %379 = dma.done %s375, 128
        $region60: #{tpu_custom_call.1} parent=55 // pred_fallthru
          _
      $region56: #{tpu_custom_call.1} parent=5 // pred_fallthru
        _
    $region6: #{tpu_custom_call.1} parent=1 // loop_footer
      %s20 = sadd.s32 1, %s16
    $region7: #{tpu_custom_call.1} parent=1 // loop_footer_branch
      %15 = sbr.rel target = $region3
    $region8: #{tpu_custom_call.1} parent=1 // loop_exit
      _
    %380 = vsyncpa [#allocation4], 1
    %s381 = scalar_lea.sflag [#allocation4], 1
    %382 = vsyncpa %s381, 1
    %383 = vsyncpa [#allocation7], 1
    %s384 = scalar_lea.sflag [#allocation7], 1
    %385 = vsyncpa %s384, 1
    %386 = vsyncpa [#allocation5], 1
    %s387 = scalar_lea.sflag [#allocation5], 1
    %388 = vsyncpa %s387, 1

</llo_original>
